<compile_context>
chip_gen: v6e
topology: v6e:2x2x1
jax: 0.10.0
libtpu: 0.0.40
codegen_flags: <defaults>
</compile_context>

<pallas_src>
import jax
import jax.numpy as jnp
from jax.experimental import pallas as pl
from jax.experimental.pallas import tpu as pltpu


_LANE = 128
_QMIN, _QMAX, _LEVELS = -128.0, 127.0, 127.0


def _cdiv(a: int, b: int) -> int:
    return (a + b - 1) // b


def _round_up(x: int, m: int) -> int:
    return _cdiv(x, m) * m


def _vmem_capacity_bytes() -> int:
    try:
        cap = int(pltpu.get_tpu_info().vmem_capacity_bytes)
    except Exception:
        cap = 64 * 1024 * 1024          # conservative fallback (v7x-sized VMEM)
    return max(cap, 32 * 1024 * 1024)


# ---------------------------------------------------------------------------
# Row-wise (last-axis) symmetric int8 fake quantization.
# ---------------------------------------------------------------------------
def _row_fake_quant(x):
    """In-kernel: per-row reciprocal + broadcast multiply (no tile-wide divide)."""
    amax = jnp.max(jnp.abs(x), axis=-1, keepdims=True)
    # TODO(synk): the 1e-8 floor approximates the torch FakeQuantizer's
    # zero-row / eps handling; adjust if bit-exact zero-row behavior is needed.
    scale = jnp.maximum(amax, 1e-8) * (1.0 / _LEVELS)
    inv = pl.reciprocal(scale, approx=False)          # exact; (rows, 1) vector
    q = jnp.clip(jnp.round(x * inv), _QMIN, _QMAX)
    return q * scale


def _row_fake_quant_ref(x):
    amax = jnp.max(jnp.abs(x), axis=-1, keepdims=True)
    scale = jnp.maximum(amax, 1e-8) * (1.0 / _LEVELS)
    q = jnp.clip(jnp.round(x * (1.0 / scale)), _QMIN, _QMAX)
    return q * scale


# ---------------------------------------------------------------------------
# Prepass kernel: fake-quantize the rows (last axis) of a (B, R, C) array.
# ---------------------------------------------------------------------------
def _row_quant_kernel(x_ref, o_ref):
    o_ref[...] = _row_fake_quant(x_ref[...].astype(jnp.float32)).astype(o_ref.dtype)


def _row_quant_pallas(x, out_dtype, budget, vmem_limit):
    """Row-wise fake quant of (B, R, C); R multiple of 8, C multiple of 128."""
    B, R, C = x.shape
    in_b = jnp.dtype(x.dtype).itemsize
    out_b = jnp.dtype(out_dtype).itemsize
    # Per-row VMEM cost: double-buffered in/out blocks + ~2 f32 temporaries.
    per_row = C * (2 * in_b + 2 * out_b + 8)
    target = max(budget // 2, 8 * per_row)
    tr = R                                            # tr always divides R
    while tr % 2 == 0 and (tr // 2) % 8 == 0 and tr * per_row > target:
        tr //= 2
    return pl.pallas_call(
        _row_quant_kernel,
        out_shape=jax.ShapeDtypeStruct((B, R, C), out_dtype),
        grid_spec=pltpu.PrefetchScalarGridSpec(
            num_scalar_prefetch=0,
            grid=(B, R // tr),
            in_specs=[pl.BlockSpec((None, tr, C), lambda b, r: (b, r, 0))],
            out_specs=pl.BlockSpec((None, tr, C), lambda b, r: (b, r, 0)),
        ),
        compiler_params=pltpu.CompilerParams(
            dimension_semantics=("parallel", "parallel"),
            vmem_limit_bytes=vmem_limit,
        ),
    )(x)


# ---------------------------------------------------------------------------
# Main kernels.
# ---------------------------------------------------------------------------
def _qmm_fused_kernel(x1_ref, q2_ref, o_ref):
    # input1_quantizer (row-wise over full K) + the '.to(inputs2)' cast; MXU
    # operands stay in inputs2.dtype (native bf16 path when inputs are bf16).
    q1 = _row_fake_quant(x1_ref[...].astype(jnp.float32)).astype(q2_ref.dtype)
    y = jnp.dot(q1, q2_ref[...], preferred_element_type=jnp.float32)
    # output_quantizer (row-wise over N).
    o_ref[...] = _row_fake_quant(y).astype(o_ref.dtype)


def _qmm_ktiled_kernel(q1_ref, q2_ref, o_ref, acc_ref):
    @pl.when(pl.program_id(2) == 0)
    def _():
        acc_ref[...] = jnp.zeros_like(acc_ref)

    acc_ref[...] += jnp.dot(q1_ref[...], q2_ref[...],
                            preferred_element_type=jnp.float32)

    @pl.when(pl.program_id(2) == pl.num_programs(2) - 1)
    def _():
        o_ref[...] = _row_fake_quant(acc_ref[...]).astype(o_ref.dtype)


# ---------------------------------------------------------------------------
# Wrapper: padding, tile selection and pallas_call dispatch.
# ---------------------------------------------------------------------------
def qmatmul(inputs1: jax.Array, inputs2: jax.Array, *,
            tm_max: int = 512, force_ktiled: bool = False) -> jax.Array:
    """Fake-quantized batched matmul: (B, M, K) @ (B, K, N) -> (B, M, N)."""
    B, M, K = inputs1.shape
    B2, K2, N = inputs2.shape
    assert B == B2 and K == K2, "shape mismatch"
    out_dtype = inputs2.dtype

    bf16 = (inputs1.dtype == jnp.bfloat16) or (inputs2.dtype == jnp.bfloat16)
    sub = 16 if bf16 else 8
    K_p = _round_up(K, _LANE)
    N_p = _round_up(N, _LANE)

    in1_b = jnp.dtype(inputs1.dtype).itemsize
    q_b = jnp.dtype(inputs2.dtype).itemsize
    out_b = jnp.dtype(out_dtype).itemsize

    # Generation-aware VMEM budget (~96 MiB on v5e/v6e, ~48 MiB on v7x).
    vmem_cap = _vmem_capacity_bytes()
    budget = int(vmem_cap * 0.75)
    vmem_limit = int(min(vmem_cap - (2 << 20), budget + (16 << 20)))

    cost = pl.CostEstimate(
        flops=2 * B * M * N * K,
        bytes_accessed=B * (M * K * in1_b + K * N * q_b + M * N * out_b),
        transcendentals=0,
    )

    # ------------------------- fused path (RHS resident) --------------------
    def fused_vmem(tm_):
        return (2 * tm_ * K_p * in1_b       # x1 blocks (double-buffered)
                + 2 * K_p * N_p * q_b       # q2 blocks (double-buffered)
                + 2 * tm_ * N_p * out_b     # out blocks
                + 2 * tm_ * K_p * 4         # f32 x1 copy + quant temp
                + 2 * tm_ * N_p * 4)        # f32 dot result + output-quant temp

    tm_sel = max(sub, (min(tm_max, _round_up(M, sub)) // sub) * sub)
    # Shrink toward an MXU-friendly floor (128); below that, fail over to the
    # K-tiled path instead of starving the MXU with sublane-sized tiles.
    while fused_vmem(tm_sel) > budget and tm_sel > 128:
        tm_sel = max(128, ((tm_sel // 2) // sub) * sub)
    use_fused = (not force_ktiled) and fused_vmem(tm_sel) <= budget

    if use_fused:
        ntiles_m = max(1, _cdiv(M, tm_sel))
        tm = _round_up(_cdiv(M, ntiles_m), sub)       # balanced: minimal M padding
        M_p = ntiles_m * tm

        x1p = inputs1
        if (M_p, K_p) != (M, K):
            x1p = jnp.pad(inputs1, ((0, 0), (0, M_p - M), (0, K_p - K)))
        x2p = inputs2
        if (K_p, N_p) != (K, N):
            x2p = jnp.pad(inputs2, ((0, 0), (0, K_p - K), (0, N_p - N)))

        # Prepass: input2_quantizer (row-wise over N), ahead of the matmul grid.
        q2 = _row_quant_pallas(x2p, inputs2.dtype, budget, vmem_limit)

        out = pl.pallas_call(
            _qmm_fused_kernel,
            out_shape=jax.ShapeDtypeStruct((B, M_p, N_p), out_dtype),
            grid_spec=pltpu.PrefetchScalarGridSpec(
                num_scalar_prefetch=0,
                grid=(B, ntiles_m),
                in_specs=[
                    pl.BlockSpec((None, tm, K_p), lambda b, m: (b, m, 0)),
                    # RHS block constant across M tiles -> re-DMA'd once per batch.
                    pl.BlockSpec((None, K_p, N_p), lambda b, m: (b, 0, 0)),
                ],
                out_specs=pl.BlockSpec((None, tm, N_p), lambda b, m: (b, m, 0)),
            ),
            compiler_params=pltpu.CompilerParams(
                # No cross-M state (RHS quant is a prepass), so both axes are
                # "parallel" -> v7x dual-TC gets work even when B == 1.
                dimension_semantics=("parallel", "parallel"),
                vmem_limit_bytes=vmem_limit,
            ),
            cost_estimate=cost,
        )(x1p, q2)

        if (M_p, N_p) != (M, N):
            out = out[:, :M, :N]
        return out

    # ---------------- K-tiled fallback (large K_p*N_p, esp. v7x) ------------
    def ktiled_vmem(tm_, tk_):
        return (2 * tm_ * tk_ * q_b         # q1 blocks
                + 2 * tk_ * N_p * q_b       # q2 blocks
                + 2 * tm_ * N_p * out_b     # out blocks
                + tm_ * N_p * 4             # f32 accumulator scratch
                + 2 * tm_ * N_p * 4)        # output-quant f32 temps

    tm = max(sub, (min(256, _round_up(M, sub)) // sub) * sub)

    def pick_tk(tk_target):
        ntk_ = max(1, _cdiv(K_p, tk_target))
        return ntk_, _round_up(_cdiv(K_p, ntk_), _LANE)

    tk_target = 512
    ntk, tk = pick_tk(tk_target)
    while ktiled_vmem(tm, tk) > budget and tk > _LANE:
        tk_target = max(_LANE, tk_target // 2)
        ntk, tk = pick_tk(tk_target)
    if ktiled_vmem(tm, tk) > budget and tm > 128:
        tm = max(128, ((tm // 2) // sub) * sub)
    # TODO(synk): if (tm=128, tk=128) still exceeds the budget (very large N),
    # an N-tiled design with RHS/output scale prepasses is required.

    ntiles_m = max(1, _cdiv(M, tm))
    tm = _round_up(_cdiv(M, ntiles_m), sub)
    M_p = ntiles_m * tm
    K_pp = ntk * tk

    x1p = inputs1
    if (M_p, K_pp) != (M, K):
        x1p = jnp.pad(inputs1, ((0, 0), (0, M_p - M), (0, K_pp - K)))
    x2p = inputs2
    if (K_pp, N_p) != (K, N):
        x2p = jnp.pad(inputs2, ((0, 0), (0, K_pp - K), (0, N_p - N)))

    # Prepasses: per-row scales must span the FULL K (resp. N) rows, so both
    # operands are fake-quantized ahead of the K-tiled grid (zero padding is
    # exact for this quantization scheme and contributes 0 to the matmul).
    q1 = _row_quant_pallas(x1p, inputs2.dtype, budget, vmem_limit)
    q2 = _row_quant_pallas(x2p, inputs2.dtype, budget, vmem_limit)

    out = pl.pallas_call(
        _qmm_ktiled_kernel,
        out_shape=jax.ShapeDtypeStruct((B, M_p, N_p), out_dtype),
        grid_spec=pltpu.PrefetchScalarGridSpec(
            num_scalar_prefetch=0,
            grid=(B, ntiles_m, ntk),
            in_specs=[
                pl.BlockSpec((None, tm, tk), lambda b, m, k: (b, m, k)),
                pl.BlockSpec((None, tk, N_p), lambda b, m, k: (b, k, 0)),
            ],
            out_specs=pl.BlockSpec((None, tm, N_p), lambda b, m, k: (b, m, 0)),
            scratch_shapes=[pltpu.VMEM((tm, N_p), jnp.float32)],
        ),
        compiler_params=pltpu.CompilerParams(
            dimension_semantics=("parallel", "parallel", "arbitrary"),
            vmem_limit_bytes=vmem_limit,
        ),
        cost_estimate=cost,
    )(q1, q2)

    if (M_p, N_p) != (M, N):
        out = out[:, :M, :N]
    return out


# ---------------------------------------------------------------------------
# Pure-JAX reference (lightweight correctness check).
# ---------------------------------------------------------------------------
def qmatmul_ref(inputs1, inputs2):
    q1 = _row_fake_quant_ref(inputs1.astype(jnp.float32)).astype(inputs2.dtype)
    q2 = _row_fake_quant_ref(inputs2.astype(jnp.float32)).astype(inputs2.dtype)
    y = jnp.einsum("bmk,bkn->bmn", q1, q2, preferred_element_type=jnp.float32)
    return _row_fake_quant_ref(y).astype(inputs2.dtype)


if __name__ == "__main__":
    # Small shapes consistent with an attention-style matmul:
    # batch=2, seq(M)=8, hidden(K)=32, out(N)=16.
    key = jax.random.PRNGKey(0)
    k1, k2 = jax.random.split(key)
    x1 = jax.random.normal(k1, (2, 8, 32), dtype=jnp.float32)
    x2 = jax.random.normal(k2, (2, 32, 16), dtype=jnp.float32)

    ref = qmatmul_ref(x1, x2)

    out = jax.block_until_ready(qmatmul(x1, x2))
    assert out.shape == (2, 8, 16)
    assert jnp.allclose(out, ref, atol=2e-3, rtol=2e-3), "fused path mismatch"

    # Also exercise the K-tiled fallback path (forced, same small shapes).
    out_kt = jax.block_until_ready(qmatmul(x1, x2, force_ktiled=True))
    assert jnp.allclose(out_kt, ref, atol=2e-3, rtol=2e-3), "K-tiled path mismatch"

    print("KERNEL_OK")
</pallas_src>

<mosaic_0001>
module attributes {stable_mosaic.version = 11 : i64} {
  func.func @_row_quant_kernel(%arg0: i32, %arg1: i32, %arg2: memref<1x128x128xf32, #tpu.memory_space<vmem>>, %arg3: memref<1x128x128xf32, #tpu.memory_space<vmem>>) attributes {dimension_semantics = [#tpu.dimension_semantics<parallel>, #tpu.dimension_semantics<parallel>], iteration_bounds = array<i64: 2, 1>, scalar_prefetch = 0 : i64, scratch_operands = 0 : i64, tpu.core_type = #tpu.core_type<tc>, window_params = [{transform_indices = @transform_0, window_bounds = array<i64: 1, 128, 128>}, {transform_indices = @transform_1, window_bounds = array<i64: 1, 128, 128>}]} {
    %c0 = arith.constant 0 : index
    %c0_0 = arith.constant 0 : index
    %c0_1 = arith.constant 0 : index
    %0 = vector.load %arg2[%c0, %c0_0, %c0_1] : memref<1x128x128xf32, #tpu.memory_space<vmem>>, vector<1x128x128xf32>
    %1 = vector.shape_cast %0 : vector<1x128x128xf32> to vector<128x128xf32>
    %2 = math.absf %1 : vector<128x128xf32>
    %cst = arith.constant dense<0xFF800000> : vector<128xf32>
    %3 = vector.multi_reduction <maximumf>, %2, %cst [1] : vector<128x128xf32> to vector<128xf32>
    %4 = vector.shape_cast %3 : vector<128xf32> to vector<128x1xf32>
    %cst_2 = arith.constant 9.99999993E-9 : f32
    %5 = vector.broadcast %cst_2 : f32 to vector<128x1xf32>
    %6 = arith.maximumf %4, %5 : vector<128x1xf32>
    %cst_3 = arith.constant 0.00787401571 : f32
    %7 = vector.broadcast %cst_3 : f32 to vector<128x1xf32>
    %8 = arith.mulf %6, %7 : vector<128x1xf32>
    %9 = tpu.reciprocal %8 : vector<128x1xf32> -> vector<128x1xf32>
    %10 = vector.broadcast %9 : vector<128x1xf32> to vector<128x128xf32>
    %11 = arith.mulf %1, %10 : vector<128x128xf32>
    %12 = math.roundeven %11 : vector<128x128xf32>
    %cst_4 = arith.constant -1.280000e+02 : f32
    %cst_5 = arith.constant 1.270000e+02 : f32
    %13 = vector.broadcast %cst_4 : f32 to vector<128x128xf32>
    %14 = arith.maximumf %13, %12 : vector<128x128xf32>
    %15 = vector.broadcast %cst_5 : f32 to vector<128x128xf32>
    %16 = arith.minimumf %15, %14 : vector<128x128xf32>
    %17 = vector.broadcast %8 : vector<128x1xf32> to vector<128x128xf32>
    %18 = arith.mulf %16, %17 : vector<128x128xf32>
    %c0_6 = arith.constant 0 : index
    %c0_7 = arith.constant 0 : index
    %c0_8 = arith.constant 0 : index
    %19 = vector.load %arg3[%c0_6, %c0_7, %c0_8] : memref<1x128x128xf32, #tpu.memory_space<vmem>>, vector<1x128x128xf32>
    %20 = vector.shape_cast %19 : vector<1x128x128xf32> to vector<128x128xf32>
    %21 = vector.shape_cast %18 : vector<128x128xf32> to vector<1x128x128xf32>
    tpu.vector_store %arg3[%c0_6, %c0_7, %c0_8], %21 {strides = array<i32>} : memref<1x128x128xf32, #tpu.memory_space<vmem>>, vector<1x128x128xf32>,
    return
  }
  func.func @transform_0(%arg0: i32, %arg1: i32) -> (i32, i32, i32) {
    %c0_i32 = arith.constant 0 : i32
    %c0_i32_0 = arith.constant 0 : i32
    return %arg0, %arg1, %c0_i32 : i32, i32, i32
  }
  func.func @transform_1(%arg0: i32, %arg1: i32) -> (i32, i32, i32) {
    %c0_i32 = arith.constant 0 : i32
    %c0_i32_0 = arith.constant 0 : i32
    return %arg0, %arg1, %c0_i32 : i32, i32, i32
  }
}

</mosaic_0001>

<llo_original>
// kernel: tpu_custom_call.1
$region0: #{tpu_custom_call.1}
  #allocation0 [shape = 'u32[]', space=smem, size = 0x4, offset = 0x4, fixed_abs, tag = 'smem constant byte address 0x4 - core index']
  #allocation1 [shape = 'u32[144,128]{1,0:T(1,128)}', space=vmem, size = 0x12000, scoped, tag = 'internal scratch']
  %s0 = inlined_call_operand.hbm [shape: f32[2,128,128], index: 0, kind: input, shape index: {}]
  %s1 = inlined_call_operand.hbm [shape: f32[2,128,128], index: 1, kind: output, shape index: {}]
  %s2 = sld [smem:[#allocation0]]
  $region41: #{tpu_custom_call.1} parent=0
    _
  %s4 = ssub.s32 1, %s2
  %s5 = scalar_select 0, %s4, %s2
  $region1: #{tpu_custom_call.1} parent=0
    #allocation2 [shape = 'u8[131072]{0}', space=vmem, size = 0x20000, scoped, tag = 'input window, operand 0']
    #allocation3 [shape = 's32[2]{0}', space=sflag, size = 0x8, scoped, tag = 'scoped memory for tpu_custom_call.1']
    #allocation4 [shape = 's32[2]{0}', space=sflag, size = 0x8, scoped, tag = 'scoped memory for tpu_custom_call.1']
    #allocation5 [shape = 'u8[131072]{0}', space=vmem, size = 0x20000, scoped, tag = 'output window, operand 0']
    %6 = vsyncpa [#allocation3], 0
    %s7 = scalar_lea.sflag [#allocation3], 1
    %8 = vsyncpa %s7, 0
    %9 = vsyncpa [#allocation4], 0
    %s10 = scalar_lea.sflag [#allocation4], 1
    %11 = vsyncpa %s10, 0
    loop: start=0, step=1, limit=4
    $region2: #{tpu_custom_call.1} parent=1 // loop_pre_header
      _
    $region3: #{tpu_custom_call.1} parent=1 // loop_header
      %s13 = sphi 0, %s17
      %p14 = scmp.ge.s32.totalorder %s13, 4
      %s20 = sphi 0, %s32
      %s21 = sphi 0, %s28
      %s22 = sphi 0, %s20
      %s23 = sphi 0, %s21
      %s24 = sphi 0, %s22
      %s25 = sphi 0, %s23
      %s37 = sphi 0, %s39
      %s40 = sphi 0, %s37
      %s41 = sphi 0, %s40
      %s57 = sphi 0, %s41
      %s65 = sphi 0, %s67
      %s68 = sphi 0, %s65
      %s69 = sphi 0, %s68
      %s85 = sphi 0, %s69
    $region4: #{tpu_custom_call.1} parent=1 // loop_header_branch
      %16 = sbr.rel (%p14) target = $region8
    $region5: #{tpu_custom_call.1} parent=1 // loop_body
      %s18 = ssub.s32 %s13, 1
      %s19 = ssub.s32 %s13, 2
      %s26 = sadd.s32 1, %s21
      %p27 = scmp.ge.s32.totalorder %s26, 1
      %s28 = scalar_select %p27, 0, %s26
      %s29 = sadd.s32 1, %s20
      %s30 = scalar_select %p27, %s29, %s20
      %p31 = scmp.ge.s32.totalorder %s30, 2
      %s32 = scalar_select %p31, 0, %s30
      %s33 = ssub.s32 %s20, %s32
      %s34 = ssub.s32 %s21, %s28
      %s35 = sor.u32 %s33, %s34
      %p36 = scmp.eq.s32.totalorder %s35, 0
      %s38 = sadd.s32 %s37, 1
      %s39 = scalar_select %p36, %s37, %s38
      %p42 = pneg %p36
      %p43 = scmp.eq.s32.totalorder %s13, 1
      %p44 = por %p42, %p43
      %p45 = scmp.ne.s32.totalorder %s37, %s40
      %p46 = scmp.eq.s32.totalorder %s13, 0
      %p47 = por %p45, %p46
      %p48 = scmp.ne.s32.totalorder %s37, %s40
      %p49 = scmp.eq.s32.totalorder %s18, 1
      %p50 = por %p48, %p49
      %p51 = scmp.ne.s32.totalorder %s40, %s41
      %p52 = scmp.eq.s32.totalorder %s18, 0
      %p53 = por %p51, %p52
      %p54 = scmp.ne.s32.totalorder %s40, %s41
      %p55 = scmp.eq.s32.totalorder %s19, 1
      %p56 = por %p54, %p55
      %p58 = scmp.ne.s32.totalorder %s41, %s57
      %p59 = scmp.eq.s32.totalorder %s19, 0
      %p60 = por %p58, %p59
      %s61 = ssub.s32 %s20, %s32
      %s62 = ssub.s32 %s21, %s28
      %s63 = sor.u32 %s61, %s62
      %p64 = scmp.eq.s32.totalorder %s63, 0
      %s66 = sadd.s32 %s65, 1
      %s67 = scalar_select %p64, %s65, %s66
      %p70 = pneg %p64
      %p71 = scmp.eq.s32.totalorder %s13, 1
      %p72 = por %p70, %p71
      %p73 = scmp.ne.s32.totalorder %s65, %s68
      %p74 = scmp.eq.s32.totalorder %s13, 0
      %p75 = por %p73, %p74
      %p76 = scmp.ne.s32.totalorder %s65, %s68
      %p77 = scmp.eq.s32.totalorder %s18, 1
      %p78 = por %p76, %p77
      %p79 = scmp.ne.s32.totalorder %s68, %s69
      %p80 = scmp.eq.s32.totalorder %s18, 0
      %p81 = por %p79, %p80
      %p82 = scmp.ne.s32.totalorder %s68, %s69
      %p83 = scmp.eq.s32.totalorder %s19, 1
      %p84 = por %p82, %p83
      %p86 = scmp.ne.s32.totalorder %s69, %s85
      %p87 = scmp.eq.s32.totalorder %s19, 0
      %p88 = por %p86, %p87
      %p89 = scmp.le.s32.totalorder 1, %s13
      %p90 = scmp.lt.s32.totalorder %s13, 3
      %p91 = pnand %p89, %p90
      %p92 = pneg %p91
      // Predicated region
      $region9: #{tpu_custom_call.1} parent=5 // pred_check
        _
      $region10: #{tpu_custom_call.1} parent=5 // pred_check_branch
        %94 = sbr.rel (%p91) target = $region12
      $region11: #{tpu_custom_call.1} parent=5 // pred_region
        %s95 = ssub.s32 %s13, 1
      $region12: #{tpu_custom_call.1} parent=5 // pred_fallthru
        _
      %p96 = scmp.lt.s32.totalorder %s13, 2
      // Predicated region
      $region13: #{tpu_custom_call.1} parent=5 // pred_check
        %p97 = pneg %p96
      $region14: #{tpu_custom_call.1} parent=5 // pred_check_branch
        %99 = sbr.rel (%p97) target = $region16
      $region15: #{tpu_custom_call.1} parent=5 // pred_region
        // Predicated region
        $region17: #{tpu_custom_call.1} parent=15 // pred_check
          %p100 = pneg %p47
        $region18: #{tpu_custom_call.1} parent=15 // pred_check_branch
          %102 = sbr.rel (%p100) target = $region20
        $region19: #{tpu_custom_call.1} parent=15 // pred_region
          %s103 = sand.u32 %s37, 1
          %s104 = scalar_lea.sflag [#allocation3], %s103
          %s105 = sand.u32 %s37, 1
          %s106 = smul.addr %s105, 128
          %s107 = scalar_lea.vmem [#allocation2], %s106
          %s108 = smul.u32 16, %s21
          %s110 = ssub.s32 2048, 2048
          %111 = vsyncadd %s104, %s110
          %s112 = smul.addr %s20, 16
          %s113 = sadd.s32 %s108, %s112
          %s114 = smul.addr %s113, 128
          %s115 = scalar_lea.hbm %s0, %s114
          %s116 = sshll.u32 %s107, 4
          %s117 = int_to_ptr.vmem [resolvable:$true] %s116
          %122 = dma.hbm_to_vmem [thread:$0]  %s115, 2048, %s117, %s104, 128, 128, 8
        $region20: #{tpu_custom_call.1} parent=15 // pred_fallthru
          _
      $region16: #{tpu_custom_call.1} parent=5 // pred_fallthru
        _
      %p123 = scmp.le.s32.totalorder 1, %s13
      %p124 = scmp.lt.s32.totalorder %s13, 3
      %p125 = pnand %p123, %p124
      %p126 = pneg %p125
      // Predicated region
      $region21: #{tpu_custom_call.1} parent=5 // pred_check
        _
      $region22: #{tpu_custom_call.1} parent=5 // pred_check_branch
        %128 = sbr.rel (%p125) target = $region24
      $region23: #{tpu_custom_call.1} parent=5 // pred_region
        %s129 = ssub.s32 %s13, 1
        %s130 = sand.u32 %s40, 1
        %s131 = scalar_lea.sflag [#allocation3], %s130
        %s132 = sand.u32 %s40, 1
        %s133 = smul.addr %s132, 128
        %s134 = scalar_lea.vmem [#allocation2], %s133
        // Predicated region
        $region25: #{tpu_custom_call.1} parent=23 // pred_check
          %p135 = pneg %p53
        $region26: #{tpu_custom_call.1} parent=23 // pred_check_branch
          %137 = sbr.rel (%p135) target = $region28
        $region27: #{tpu_custom_call.1} parent=23 // pred_region
          %138 = dma.done %s131, 2048
        $region28: #{tpu_custom_call.1} parent=23 // pred_fallthru
          _
        %s139 = sand.u32 %s40, 1
        %s140 = scalar_lea.sflag [#allocation3], %s139
        %s141 = sand.u32 %s40, 1
        %s142 = smul.addr %s141, 128
        %s143 = scalar_lea.vmem [#allocation2], %s142
        %p144 = pneg %p53
        %p145 = pneg %p50
        %p146 = pneg %p81
        %p147 = pneg %p78
        %s148 = sand.u32 %s68, 1
        %s149 = scalar_lea.sflag [#allocation4], %s148
        %s150 = sand.u32 %s68, 1
        %s151 = smul.addr %s150, 128
        %s152 = scalar_lea.vmem [#allocation5], %s151
        %s153 = smul.u32 16, %s23
        %s154 = smul.u32 16, %s23
        %v155 = vld [vmem:[%s134] sm:$0xff]
        %v156 = vld [vmem:[%s134 + $0x8] sm:$0xff]
        %v157 = vld [vmem:[%s134 + $0x10] sm:$0xff]
        %v158 = vld [vmem:[%s134 + $0x18] sm:$0xff]
        %v159 = vld [vmem:[%s134 + $0x20] sm:$0xff]
        %v160 = vld [vmem:[%s134 + $0x28] sm:$0xff]
        %v161 = vld [vmem:[%s134 + $0x30] sm:$0xff]
        %v162 = vld [vmem:[%s134 + $0x38] sm:$0xff]
        %v163 = vld [vmem:[%s134 + $0x40] sm:$0xff]
        %v164 = vld [vmem:[%s134 + $0x48] sm:$0xff]
        %v165 = vld [vmem:[%s134 + $0x50] sm:$0xff]
        %v166 = vld [vmem:[%s134 + $0x58] sm:$0xff]
        %v167 = vld [vmem:[%s134 + $0x60] sm:$0xff]
        %v168 = vld [vmem:[%s134 + $0x68] sm:$0xff]
        %v169 = vld [vmem:[%s134 + $0x70] sm:$0xff]
        %v170 = vld [vmem:[%s134 + $0x78] sm:$0xff]
        %v171 = vand.u32 2147483647, %v155
        %v172 = vand.u32 2147483647, %v156
        %v173 = vand.u32 2147483647, %v157
        %v174 = vand.u32 2147483647, %v158
        %v175 = vand.u32 2147483647, %v159
        %v176 = vand.u32 2147483647, %v160
        %v177 = vand.u32 2147483647, %v161
        %v178 = vand.u32 2147483647, %v162
        %v179 = vand.u32 2147483647, %v163
        %v180 = vand.u32 2147483647, %v164
        %v181 = vand.u32 2147483647, %v165
        %v182 = vand.u32 2147483647, %v166
        %v183 = vand.u32 2147483647, %v167
        %v184 = vand.u32 2147483647, %v168
        %v185 = vand.u32 2147483647, %v169
        %v186 = vand.u32 2147483647, %v170
        %187 = vmax.xlane.f32.xlu0 %v171
        %v188 = vpop.xlane.xlu0 %187
        %189 = vmax.xlane.f32.xlu0 %v172
        %v190 = vpop.xlane.xlu0 %189
        %191 = vmax.xlane.f32.xlu0 %v173
        %v192 = vpop.xlane.xlu0 %191
        %193 = vmax.xlane.f32.xlu0 %v174
        %v194 = vpop.xlane.xlu0 %193
        %195 = vmax.xlane.f32.xlu0 %v175
        %v196 = vpop.xlane.xlu0 %195
        %197 = vmax.xlane.f32.xlu0 %v176
        %v198 = vpop.xlane.xlu0 %197
        %199 = vmax.xlane.f32.xlu0 %v177
        %v200 = vpop.xlane.xlu0 %199
        %201 = vmax.xlane.f32.xlu0 %v178
        %v202 = vpop.xlane.xlu0 %201
        %203 = vmax.xlane.f32.xlu0 %v179
        %v204 = vpop.xlane.xlu0 %203
        %205 = vmax.xlane.f32.xlu0 %v180
        %v206 = vpop.xlane.xlu0 %205
        %207 = vmax.xlane.f32.xlu0 %v181
        %v208 = vpop.xlane.xlu0 %207
        %209 = vmax.xlane.f32.xlu0 %v182
        %v210 = vpop.xlane.xlu0 %209
        %211 = vmax.xlane.f32.xlu0 %v183
        %v212 = vpop.xlane.xlu0 %211
        %213 = vmax.xlane.f32.xlu0 %v184
        %v214 = vpop.xlane.xlu0 %213
        %215 = vmax.xlane.f32.xlu0 %v185
        %v216 = vpop.xlane.xlu0 %215
        %217 = vmax.xlane.f32.xlu0 %v186
        %v218 = vpop.xlane.xlu0 %217
        %v219 = vmax.f32 %v188, 1e-08
        %v220 = vmax.f32 %v190, 1e-08
        %v221 = vmax.f32 %v192, 1e-08
        %v222 = vmax.f32 %v194, 1e-08
        %v223 = vmax.f32 %v196, 1e-08
        %v224 = vmax.f32 %v198, 1e-08
        %v225 = vmax.f32 %v200, 1e-08
        %v226 = vmax.f32 %v202, 1e-08
        %v227 = vmax.f32 %v204, 1e-08
        %v228 = vmax.f32 %v206, 1e-08
        %v229 = vmax.f32 %v208, 1e-08
        %v230 = vmax.f32 %v210, 1e-08
        %v231 = vmax.f32 %v212, 1e-08
        %v232 = vmax.f32 %v214, 1e-08
        %v233 = vmax.f32 %v216, 1e-08
        %v234 = vmax.f32 %v218, 1e-08
        %v235 = vmul.f32 %v219, 0.007874016
        %v236 = vmul.f32 %v220, 0.007874016
        %v237 = vmul.f32 %v221, 0.007874016
        %v238 = vmul.f32 %v222, 0.007874016
        %v239 = vmul.f32 %v223, 0.007874016
        %v240 = vmul.f32 %v224, 0.007874016
        %v241 = vmul.f32 %v225, 0.007874016
        %v242 = vmul.f32 %v226, 0.007874016
        %v243 = vmul.f32 %v227, 0.007874016
        %v244 = vmul.f32 %v228, 0.007874016
        %v245 = vmul.f32 %v229, 0.007874016
        %v246 = vmul.f32 %v230, 0.007874016
        %v247 = vmul.f32 %v231, 0.007874016
        %v248 = vmul.f32 %v232, 0.007874016
        %v249 = vmul.f32 %v233, 0.007874016
        %v250 = vmul.f32 %v234, 0.007874016
        %v251 = vrcp.pop %v235
        %v252 = vrcp.pop %v236
        %v253 = vrcp.pop %v237
        %v254 = vrcp.pop %v238
        %v255 = vrcp.pop %v239
        %v256 = vrcp.pop %v240
        %v257 = vrcp.pop %v241
        %v258 = vrcp.pop %v242
        %v259 = vrcp.pop %v243
        %v260 = vrcp.pop %v244
        %v261 = vrcp.pop %v245
        %v262 = vrcp.pop %v246
        %v263 = vrcp.pop %v247
        %v264 = vrcp.pop %v248
        %v265 = vrcp.pop %v249
        %v266 = vrcp.pop %v250
        %v267 = vmul.f32 %v155, %v251
        %v268 = vmul.f32 %v156, %v252
        %v269 = vmul.f32 %v157, %v253
        %v270 = vmul.f32 %v158, %v254
        %v271 = vmul.f32 %v159, %v255
        %v272 = vmul.f32 %v160, %v256
        %v273 = vmul.f32 %v161, %v257
        %v274 = vmul.f32 %v162, %v258
        %v275 = vmul.f32 %v163, %v259
        %v276 = vmul.f32 %v164, %v260
        %v277 = vmul.f32 %v165, %v261
        %v278 = vmul.f32 %v166, %v262
        %v279 = vmul.f32 %v167, %v263
        %v280 = vmul.f32 %v168, %v264
        %v281 = vmul.f32 %v169, %v265
        %v282 = vmul.f32 %v170, %v266
        %v283 = vround.ne.pseudo %v267
        %v284 = vround.ne.pseudo %v268
        %v285 = vround.ne.pseudo %v269
        %v286 = vround.ne.pseudo %v270
        %v287 = vround.ne.pseudo %v271
        %v288 = vround.ne.pseudo %v272
        %v289 = vround.ne.pseudo %v273
        %v290 = vround.ne.pseudo %v274
        %v291 = vround.ne.pseudo %v275
        %v292 = vround.ne.pseudo %v276
        %v293 = vround.ne.pseudo %v277
        %v294 = vround.ne.pseudo %v278
        %v295 = vround.ne.pseudo %v279
        %v296 = vround.ne.pseudo %v280
        %v297 = vround.ne.pseudo %v281
        %v298 = vround.ne.pseudo %v282
        %v299 = vmax.f32 %v283, -128.0
        %v300 = vmax.f32 %v284, -128.0
        %v301 = vmax.f32 %v285, -128.0
        %v302 = vmax.f32 %v286, -128.0
        %v303 = vmax.f32 %v287, -128.0
        %v304 = vmax.f32 %v288, -128.0
        %v305 = vmax.f32 %v289, -128.0
        %v306 = vmax.f32 %v290, -128.0
        %v307 = vmax.f32 %v291, -128.0
        %v308 = vmax.f32 %v292, -128.0
        %v309 = vmax.f32 %v293, -128.0
        %v310 = vmax.f32 %v294, -128.0
        %v311 = vmax.f32 %v295, -128.0
        %v312 = vmax.f32 %v296, -128.0
        %v313 = vmax.f32 %v297, -128.0
        %v314 = vmax.f32 %v298, -128.0
        %v315 = vmin.f32 %v299, 127.0
        %v316 = vmin.f32 %v300, 127.0
        %v317 = vmin.f32 %v301, 127.0
        %v318 = vmin.f32 %v302, 127.0
        %v319 = vmin.f32 %v303, 127.0
        %v320 = vmin.f32 %v304, 127.0
        %v321 = vmin.f32 %v305, 127.0
        %v322 = vmin.f32 %v306, 127.0
        %v323 = vmin.f32 %v307, 127.0
        %v324 = vmin.f32 %v308, 127.0
        %v325 = vmin.f32 %v309, 127.0
        %v326 = vmin.f32 %v310, 127.0
        %v327 = vmin.f32 %v311, 127.0
        %v328 = vmin.f32 %v312, 127.0
        %v329 = vmin.f32 %v313, 127.0
        %v330 = vmin.f32 %v314, 127.0
        %v331 = vmul.f32 %v315, %v235
        %v332 = vmul.f32 %v316, %v236
        %v333 = vmul.f32 %v317, %v237
        %v334 = vmul.f32 %v318, %v238
        %v335 = vmul.f32 %v319, %v239
        %v336 = vmul.f32 %v320, %v240
        %v337 = vmul.f32 %v321, %v241
        %v338 = vmul.f32 %v322, %v242
        %v339 = vmul.f32 %v323, %v243
        %v340 = vmul.f32 %v324, %v244
        %v341 = vmul.f32 %v325, %v245
        %v342 = vmul.f32 %v326, %v246
        %v343 = vmul.f32 %v327, %v247
        %v344 = vmul.f32 %v328, %v248
        %v345 = vmul.f32 %v329, %v249
        %v346 = vmul.f32 %v330, %v250
        %347 = vst [vmem:[%s152] sm:$0xff] %v331
        %348 = vst [vmem:[%s152 + $0x8] sm:$0xff] %v332
        %349 = vst [vmem:[%s152 + $0x10] sm:$0xff] %v333
        %350 = vst [vmem:[%s152 + $0x18] sm:$0xff] %v334
        %351 = vst [vmem:[%s152 + $0x20] sm:$0xff] %v335
        %352 = vst [vmem:[%s152 + $0x28] sm:$0xff] %v336
        %353 = vst [vmem:[%s152 + $0x30] sm:$0xff] %v337
        %354 = vst [vmem:[%s152 + $0x38] sm:$0xff] %v338
        %355 = vst [vmem:[%s152 + $0x40] sm:$0xff] %v339
        %356 = vst [vmem:[%s152 + $0x48] sm:$0xff] %v340
        %357 = vst [vmem:[%s152 + $0x50] sm:$0xff] %v341
        %358 = vst [vmem:[%s152 + $0x58] sm:$0xff] %v342
        %359 = vst [vmem:[%s152 + $0x60] sm:$0xff] %v343
        %360 = vst [vmem:[%s152 + $0x68] sm:$0xff] %v344
        %361 = vst [vmem:[%s152 + $0x70] sm:$0xff] %v345
        %362 = vst [vmem:[%s152 + $0x78] sm:$0xff] %v346
        %s363 = sand.u32 %s68, 1
        %s364 = scalar_lea.sflag [#allocation4], %s363
        %s365 = sand.u32 %s68, 1
        %s366 = smul.addr %s365, 128
        %s367 = scalar_lea.vmem [#allocation5], %s366
        // Predicated region
        $region29: #{tpu_custom_call.1} parent=23 // pred_check
          %p368 = pneg %p78
        $region30: #{tpu_custom_call.1} parent=23 // pred_check_branch
          %370 = sbr.rel (%p368) target = $region32
        $region31: #{tpu_custom_call.1} parent=23 // pred_region
          %s371 = smul.u32 16, %s23
          %s373 = ssub.s32 2048, 2048
          %374 = vsyncadd %s364, %s373
          %s375 = smul.addr %s22, 16
          %s376 = sadd.s32 %s371, %s375
          %s377 = smul.addr %s376, 128
          %s378 = scalar_lea.hbm %s1, %s377
          %s379 = sshll.u32 %s367, 4
          %s380 = int_to_ptr.vmem [resolvable:$true] %s379
          %385 = dma.vmem_to_hbm [thread:$0]  %s380, 2048, %s378, %s364, 128, 128, 8
        $region32: #{tpu_custom_call.1} parent=23 // pred_fallthru
          _
      $region24: #{tpu_custom_call.1} parent=5 // pred_fallthru
        _
      %p386 = scmp.le.s32.totalorder 2, %s13
      // Predicated region
      $region33: #{tpu_custom_call.1} parent=5 // pred_check
        %p387 = pneg %p386
      $region34: #{tpu_custom_call.1} parent=5 // pred_check_branch
        %389 = sbr.rel (%p387) target = $region36
      $region35: #{tpu_custom_call.1} parent=5 // pred_region
        %s390 = ssub.s32 %s13, 2
        // Predicated region
        $region37: #{tpu_custom_call.1} parent=35 // pred_check
          %p391 = pneg %p84
        $region38: #{tpu_custom_call.1} parent=35 // pred_check_branch
          %393 = sbr.rel (%p391) target = $region40
        $region39: #{tpu_custom_call.1} parent=35 // pred_region
          %s394 = sand.u32 %s69, 1
          %s395 = scalar_lea.sflag [#allocation4], %s394
          %s396 = sand.u32 %s69, 1
          %s397 = smul.addr %s396, 128
          %s398 = scalar_lea.vmem [#allocation5], %s397
          %399 = dma.done %s395, 2048
        $region40: #{tpu_custom_call.1} parent=35 // pred_fallthru
          _
      $region36: #{tpu_custom_call.1} parent=5 // pred_fallthru
        _
    $region6: #{tpu_custom_call.1} parent=1 // loop_footer
      %s17 = sadd.s32 1, %s13
    $region7: #{tpu_custom_call.1} parent=1 // loop_footer_branch
      %12 = sbr.rel target = $region3
    $region8: #{tpu_custom_call.1} parent=1 // loop_exit
      _
    %400 = vsyncpa [#allocation3], 1
    %s401 = scalar_lea.sflag [#allocation3], 1
    %402 = vsyncpa %s401, 1
    %403 = vsyncpa [#allocation4], 1
    %s404 = scalar_lea.sflag [#allocation4], 1
    %405 = vsyncpa %s404, 1

</llo_original>
